<compile_context>
chip_gen: v7x
topology: tpu7x:2x2x1
jax: 0.10.0
libtpu: 0.0.40
codegen_flags: <defaults>
</compile_context>

<pallas_src>
import functools

import jax
import jax.numpy as jnp
from jax import lax
from jax.experimental import pallas as pl
from jax.experimental.pallas import tpu as pltpu

# ---------------------------------------------------------------------------
# VGG19 layer names (truncated dynamically, like the PyTorch module)
# ---------------------------------------------------------------------------
VGG19_NAMES = [
    'conv1_1', 'relu1_1', 'conv1_2', 'relu1_2', 'pool1',
    'conv2_1', 'relu2_1', 'conv2_2', 'relu2_2', 'pool2',
    'conv3_1', 'relu3_1', 'conv3_2', 'relu3_2', 'conv3_3', 'relu3_3',
    'conv3_4', 'relu3_4', 'pool3',
    'conv4_1', 'relu4_1', 'conv4_2', 'relu4_2', 'conv4_3', 'relu4_3',
    'conv4_4', 'relu4_4', 'pool4',
    'conv5_1', 'relu5_1', 'conv5_2', 'relu5_2', 'conv5_3', 'relu5_3',
    'conv5_4', 'relu5_4', 'pool5',
]
STAGE_CH = {1: 64, 2: 128, 3: 256, 4: 512, 5: 512}

IMAGENET_MEAN = jnp.array([0.485, 0.456, 0.406], jnp.float32)
IMAGENET_STD = jnp.array([0.229, 0.224, 0.225], jnp.float32)

TILE_COUT = 128  # MXU-native output width (128 on v5e; 256 also fine on v6e/v7x)


def _conv_in_out(name):
    stage = int(name[4])
    idx = int(name[6])
    cout = STAGE_CH[stage]
    if idx == 1:
        cin = 3 if stage == 1 else STAGE_CH[stage - 1]
    else:
        cin = cout
    return cin, cout


# ---------------------------------------------------------------------------
# Fused conv (+bias)(+ReLU)(+maxpool) Pallas kernel
# ---------------------------------------------------------------------------
def _conv_block_kernel(x_ref, w_ref, b_ref, o_ref, *, H, W, prepatched,
                       apply_relu, apply_pool):
    """One (batch, Cout-tile) block of: 3x3 conv + bias [+ ReLU] [+ 2x2/2 maxpool]."""
    if prepatched:
        # x_ref: (1, H, W, 9*Cin) -- taps already gathered on the wrapper side (Cin=3).
        patches = x_ref[0].reshape(H * W, x_ref.shape[-1])
    else:
        # x_ref: (1, H+2, W+2, Cin) padded input. Build ONE im2col buffer and do a
        # single MXU matmul with K = 9*Cin instead of 9 small K=Cin matmuls.
        xp = x_ref[0]
        cin = xp.shape[-1]
        cols = [xp[dy:dy + H, dx:dx + W, :].reshape(H * W, cin)
                for dy in range(3) for dx in range(3)]
        patches = jnp.concatenate(cols, axis=-1)            # (H*W, 9*Cin), bf16

    # bf16 x bf16 -> f32 accumulate on the MXU (no Precision.HIGHEST emulation).
    acc = jnp.dot(patches, w_ref[...], preferred_element_type=jnp.float32)
    acc = acc + b_ref[...].astype(jnp.float32)               # (1, TC) broadcast, f32
    if apply_relu:
        acc = jnp.maximum(acc, 0.0)                          # f32 VPU (v5e-safe)
    y = acc.reshape(H, W, acc.shape[-1])
    if apply_pool:
        he, we = (H // 2) * 2, (W // 2) * 2                  # floor odd dims (PyTorch)
        y = y[:he, :we, :]
        y = jnp.maximum(jnp.maximum(y[0::2, 0::2, :], y[1::2, 0::2, :]),
                        jnp.maximum(y[0::2, 1::2, :], y[1::2, 1::2, :]))
    o_ref[0] = y.astype(o_ref.dtype)


def conv_block(x, w2d, bias, *, prepatched, apply_relu, apply_pool,
               tile_cout=TILE_COUT):
    """Fused conv3x3(+bias)(+ReLU)(+maxpool). x is NHWC bf16:
       prepatched=False -> (N, H+2, W+2, Cin) padded input;
       prepatched=True  -> (N, H, W, 9*Cin) pre-gathered taps (used for Cin=3)."""
    n, hi, wi, cin_eff = x.shape
    h, w = (hi, wi) if prepatched else (hi - 2, wi - 2)
    k, cout = w2d.shape
    tc = min(tile_cout, cout)
    assert cout % tc == 0
    ho, wo = (h // 2, w // 2) if apply_pool else (h, w)
    kernel = functools.partial(_conv_block_kernel, H=h, W=w, prepatched=prepatched,
                               apply_relu=apply_relu, apply_pool=apply_pool)
    return pl.pallas_call(
        kernel,
        out_shape=jax.ShapeDtypeStruct((n, ho, wo, cout), jnp.bfloat16),
        grid=(n, cout // tc),
        in_specs=[
            pl.BlockSpec((1, hi, wi, cin_eff), lambda b_, c_: (b_, 0, 0, 0)),
            pl.BlockSpec((k, tc), lambda b_, c_: (0, c_)),
            pl.BlockSpec((1, tc), lambda b_, c_: (0, c_)),
        ],
        out_specs=pl.BlockSpec((1, ho, wo, tc), lambda b_, c_: (b_, 0, 0, c_)),
        compiler_params=pltpu.CompilerParams(
            dimension_semantics=("parallel", "parallel")),
    )(x, w2d, bias.reshape(1, cout))


# ---------------------------------------------------------------------------
# Standalone ReLU / maxpool kernels (only used when fusion is blocked because an
# intermediate activation is itself requested in layer_name_list)
# ---------------------------------------------------------------------------
def _relu_kernel(x_ref, o_ref):
    o_ref[...] = jnp.maximum(x_ref[...].astype(jnp.float32), 0.0).astype(o_ref.dtype)


def relu(x):
    n, h, w, c = x.shape
    return pl.pallas_call(
        _relu_kernel,
        out_shape=jax.ShapeDtypeStruct(x.shape, x.dtype),
        grid=(n,),
        in_specs=[pl.BlockSpec((1, h, w, c), lambda i: (i, 0, 0, 0))],
        out_specs=pl.BlockSpec((1, h, w, c), lambda i: (i, 0, 0, 0)),
        compiler_params=pltpu.CompilerParams(dimension_semantics=("parallel",)),
    )(x)


def _maxpool2x2_kernel(x_ref, o_ref):
    x = x_ref[0]
    he, we = (x.shape[0] // 2) * 2, (x.shape[1] // 2) * 2
    x = x[:he, :we, :]
    o_ref[0] = jnp.maximum(jnp.maximum(x[0::2, 0::2, :], x[1::2, 0::2, :]),
                           jnp.maximum(x[0::2, 1::2, :], x[1::2, 1::2, :]))


def maxpool2x2(x):
    # TODO(synk): only kernel_size=2 / pooling_stride=2 (the module defaults) is implemented.
    n, h, w, c = x.shape
    ho, wo = h // 2, w // 2
    return pl.pallas_call(
        _maxpool2x2_kernel,
        out_shape=jax.ShapeDtypeStruct((n, ho, wo, c), x.dtype),
        grid=(n,),
        in_specs=[pl.BlockSpec((1, h, w, c), lambda i: (i, 0, 0, 0))],
        out_specs=pl.BlockSpec((1, ho, wo, c), lambda i: (i, 0, 0, 0)),
        compiler_params=pltpu.CompilerParams(dimension_semantics=("parallel",)),
    )(x)


# ---------------------------------------------------------------------------
# Parameter build / preparation + fusion plan + forward
# ---------------------------------------------------------------------------
def build_params(layer_name_list, key):
    """Deterministic synthetic f32 weights for the truncated VGG19 prefix."""
    # TODO(synk): the PyTorch module loads torchvision pretrained vgg19 weights;
    # here they are synthesized deterministically (shapes match exactly).
    max_idx = max(VGG19_NAMES.index(v) for v in layer_name_list)
    names = VGG19_NAMES[:max_idx + 1]
    params = {}
    for name in names:
        if name.startswith('conv'):
            cin, cout = _conv_in_out(name)
            key, kw, kb = jax.random.split(key, 3)
            w = jax.random.normal(kw, (3, 3, cin, cout), jnp.float32) * 0.05
            b = jax.random.normal(kb, (cout,), jnp.float32) * 0.01
            params[name] = (w, b)
    return names, params


def prepare_params(names, params, use_input_norm=True):
    """Fold the input normalization into conv1_1 and pre-format weights for the
    kernels: HWIO -> (9*Cin, Cout) bf16, bias f32."""
    prepared = {}
    for name in names:
        if not name.startswith('conv'):
            continue
        w, b = params[name]
        if use_input_norm and name == 'conv1_1':
            # (x - mean)/std folded into conv1_1:  w' = w/std (per input channel),
            # b' = b - sum_taps(w' * mean). Borders stay exact because the wrapper
            # pads conv1_1's input with `mean` (whose normalized value is 0).
            w = w / IMAGENET_STD[None, None, :, None]
            b = b - jnp.einsum('hwio,i->o', w, IMAGENET_MEAN)
        cin, cout = w.shape[2], w.shape[3]
        prepared[name] = (w.reshape(9 * cin, cout).astype(jnp.bfloat16),
                          b.astype(jnp.float32))
    return prepared


def _build_plan(names, layer_name_list):
    """Group conv (+relu) (+pool) into fused blocks; a stage stays unfused only if an
    intermediate activation is itself requested in layer_name_list."""
    requested = set(layer_name_list)
    plan, i = [], 0
    while i < len(names):
        name = names[i]
        if name.startswith('conv'):
            fuse_relu = fuse_pool = False
            emit = [name] if name in requested else []
            j = i + 1
            if name not in requested and j < len(names) and names[j].startswith('relu'):
                fuse_relu = True
                rname = names[j]
                if rname in requested:
                    emit.append(rname)
                j += 1
                if rname not in requested and j < len(names) and names[j].startswith('pool'):
                    fuse_pool = True
                    pname = names[j]
                    if pname in requested:
                        emit.append(pname)
                    j += 1
            plan.append(('conv_block', name, fuse_relu, fuse_pool, emit))
            i = j
        elif name.startswith('relu'):
            plan.append(('relu', None, False, False,
                         [name] if name in requested else []))
            i += 1
        else:  # pool
            plan.append(('pool', None, False, False,
                         [name] if name in requested else []))
            i += 1
    return plan


def vgg_feature_extractor_forward(x_nchw, names, prepared, layer_name_list,
                                  use_input_norm=True):
    """Returns {layer_name: NCHW f32 feature}, matching VGGFeatureExtractor.forward."""
    mean = IMAGENET_MEAN.reshape(1, 1, 1, 3)
    x = jnp.transpose(x_nchw, (0, 2, 3, 1)).astype(jnp.float32)   # NCHW -> NHWC
    output = {}
    for op, cname, fuse_relu, fuse_pool, emit in _build_plan(names, layer_name_list):
        if op == 'conv_block':
            w2d, bias = prepared[cname]
            if cname == 'conv1_1':
                # Mean-padding keeps the folded normalization exact at the borders;
                # pre-im2col the Cin=3 input to (N, H, W, 27) for a dense K=27 matmul.
                if use_input_norm:
                    xp = jnp.pad(x - mean, ((0, 0), (1, 1), (1, 1), (0, 0))) + mean
                else:
                    xp = jnp.pad(x, ((0, 0), (1, 1), (1, 1), (0, 0)))
                h, w_sp = x.shape[1], x.shape[2]
                patches = jnp.concatenate(
                    [xp[:, dy:dy + h, dx:dx + w_sp, :]
                     for dy in range(3) for dx in range(3)], axis=-1)
                x = conv_block(patches.astype(jnp.bfloat16), w2d, bias,
                               prepatched=True, apply_relu=fuse_relu,
                               apply_pool=fuse_pool)
            else:
                xp = jnp.pad(x.astype(jnp.bfloat16),
                             ((0, 0), (1, 1), (1, 1), (0, 0)))
                x = conv_block(xp, w2d, bias, prepatched=False,
                               apply_relu=fuse_relu, apply_pool=fuse_pool)
        elif op == 'relu':
            x = relu(x)
        elif op == 'pool':
            x = maxpool2x2(x)
        for ename in emit:
            output[ename] = jnp.transpose(x, (0, 3, 1, 2)).astype(jnp.float32)
    return output


# ---------------------------------------------------------------------------
# Pure-JAX references
# ---------------------------------------------------------------------------
def _round_bf16(v):
    return v.astype(jnp.bfloat16).astype(jnp.float32)


def _ref_forward_bf16(x_nchw, names, prepared, layer_name_list):
    """Mirror of the kernel numerics (folded conv1_1, bf16 operands, f32 accumulate,
    bf16 activation storage) -- should match the Pallas path almost exactly."""
    mean = IMAGENET_MEAN.reshape(1, 1, 1, 3)
    x = jnp.transpose(x_nchw, (0, 2, 3, 1)).astype(jnp.float32)
    out = {}
    for name in names:
        if name.startswith('conv'):
            w2d, b = prepared[name]
            cin = w2d.shape[0] // 9
            w = w2d.reshape(3, 3, cin, w2d.shape[1])
            if name == 'conv1_1':
                xp = jnp.pad(x - mean, ((0, 0), (1, 1), (1, 1), (0, 0))) + mean
            else:
                xp = jnp.pad(x, ((0, 0), (1, 1), (1, 1), (0, 0)))
            y = lax.conv_general_dilated(
                xp.astype(jnp.bfloat16), w, (1, 1), 'VALID',
                dimension_numbers=('NHWC', 'HWIO', 'NHWC'),
                preferred_element_type=jnp.float32)
            x = _round_bf16(y + b.reshape(1, 1, 1, -1))
        elif name.startswith('relu'):
            x = _round_bf16(jnp.maximum(x, 0.0))
        elif name.startswith('pool'):
            x = _round_bf16(lax.reduce_window(x, -jnp.inf, lax.max,
                                              (1, 2, 2, 1), (1, 2, 2, 1), 'VALID'))
        if name in layer_name_list:
            out[name] = jnp.transpose(x, (0, 3, 1, 2))
    return out


def _ref_forward_fp32(x_nchw, names, params, layer_name_list):
    """Original-module semantics in f32 (explicit (x-mean)/std, unfolded weights)."""
    x = jnp.transpose(x_nchw, (0, 2, 3, 1)).astype(jnp.float32)
    x = (x - IMAGENET_MEAN.reshape(1, 1, 1, 3)) / IMAGENET_STD.reshape(1, 1, 1, 3)
    out = {}
    for name in names:
        if name.startswith('conv'):
            w, b = params[name]
            x = lax.conv_general_dilated(
                x, w, (1, 1), ((1, 1), (1, 1)),
                dimension_numbers=('NHWC', 'HWIO', 'NHWC'),
                precision=lax.Precision.HIGHEST) + b.reshape(1, 1, 1, -1)
        elif name.startswith('relu'):
            x = jnp.maximum(x, 0.0)
        elif name.startswith('pool'):
            x = lax.reduce_window(x, -jnp.inf, lax.max,
                                  (1, 2, 2, 1), (1, 2, 2, 1), 'VALID')
        if name in layer_name_list:
            out[name] = jnp.transpose(x, (0, 3, 1, 2))
    return out


# ---------------------------------------------------------------------------
if __name__ == "__main__":
    key = jax.random.PRNGKey(0)
    kx, kp = jax.random.split(key)

    # Small input consistent with the module: RGB image in [0, 1], NCHW.
    N, C, H, W = 2, 3, 16, 16
    x = jax.random.uniform(kx, (N, C, H, W), jnp.float32)

    layer_name_list = ['relu1_1', 'relu2_1', 'relu3_1']
    names, params = build_params(layer_name_list, kp)
    prepared = prepare_params(names, params)

    feats = vgg_feature_extractor_forward(x, names, prepared, layer_name_list)
    feats = jax.block_until_ready(feats)

    # Shape checks (NCHW, like PyTorch).
    assert feats['relu1_1'].shape == (N, 64, 16, 16)
    assert feats['relu2_1'].shape == (N, 128, 8, 8)
    assert feats['relu3_1'].shape == (N, 256, 4, 4)

    # (1) exact mirror of the kernel numerics (bf16 operands, f32 accumulate).
    ref_bf16 = jax.block_until_ready(
        _ref_forward_bf16(x, names, prepared, layer_name_list))
    for k in layer_name_list:
        if not jnp.allclose(feats[k], ref_bf16[k], rtol=1e-2, atol=1e-2):
            err = float(jnp.max(jnp.abs(feats[k] - ref_bf16[k])))
            raise AssertionError(f"bf16-mirror mismatch at {k}: max abs err {err}")

    # (2) original-module f32 semantics (loose tolerance for bf16 activations).
    ref_f32 = jax.block_until_ready(
        _ref_forward_fp32(x, names, params, layer_name_list))
    for k in layer_name_list:
        if not jnp.allclose(feats[k], ref_f32[k], rtol=1e-1, atol=1e-1):
            err = float(jnp.max(jnp.abs(feats[k] - ref_f32[k])))
            raise AssertionError(f"f32-semantics mismatch at {k}: max abs err {err}")

    print("KERNEL_OK")
</pallas_src>

<mosaic_0001>
module attributes {stable_mosaic.version = 11 : i64} {
  func.func @_conv_block_kernel(%arg0: i32, %arg1: i32, %arg2: memref<1x16x16x27xbf16, #tpu.memory_space<vmem>>, %arg3: memref<27x64xbf16, #tpu.memory_space<vmem>>, %arg4: memref<1x64xf32, #tpu.memory_space<vmem>>, %arg5: memref<1x16x16x64xbf16, #tpu.memory_space<vmem>>) attributes {dimension_semantics = [#tpu.dimension_semantics<parallel>, #tpu.dimension_semantics<parallel>], iteration_bounds = array<i64: 2, 1>, scalar_prefetch = 0 : i64, scratch_operands = 0 : i64, tpu.core_type = #tpu.core_type<tc>, window_params = [{transform_indices = @transform_0, window_bounds = array<i64: 1, 16, 16, 27>}, {transform_indices = @transform_1, window_bounds = array<i64: 27, 64>}, {transform_indices = @transform_2, window_bounds = array<i64: 1, 64>}, {transform_indices = @transform_3, window_bounds = array<i64: 1, 16, 16, 64>}]} {
    %c0 = arith.constant 0 : index
    %c0_0 = arith.constant 0 : index
    %c0_1 = arith.constant 0 : index
    %c0_2 = arith.constant 0 : index
    %0 = vector.load %arg2[%c0, %c0_0, %c0_1, %c0_2] : memref<1x16x16x27xbf16, #tpu.memory_space<vmem>>, vector<1x16x16x27xbf16>
    %1 = vector.shape_cast %0 : vector<1x16x16x27xbf16> to vector<16x16x27xbf16>
    %2 = vector.shape_cast %1 : vector<16x16x27xbf16> to vector<256x27xbf16>
    %c0_3 = arith.constant 0 : index
    %c0_4 = arith.constant 0 : index
    %3 = vector.load %arg3[%c0_3, %c0_4] : memref<27x64xbf16, #tpu.memory_space<vmem>>, vector<27x64xbf16>
    %cst = arith.constant dense<0.000000e+00> : vector<256x64xf32>
    %4 = tpu.matmul %2, %3, %cst {dimension_numbers = #tpu.dot_dimension_numbers<[1], [0], [0], [1], [0, 0, 1, 1], [], []>} : vector<256x27xbf16>, vector<27x64xbf16>, vector<256x64xf32> -> vector<256x64xf32>
    %c0_5 = arith.constant 0 : index
    %c0_6 = arith.constant 0 : index
    %5 = vector.load %arg4[%c0_5, %c0_6] : memref<1x64xf32, #tpu.memory_space<vmem>>, vector<1x64xf32>
    %6 = vector.broadcast %5 : vector<1x64xf32> to vector<256x64xf32>
    %7 = arith.addf %4, %6 : vector<256x64xf32>
    %cst_7 = arith.constant 0.000000e+00 : f32
    %8 = vector.broadcast %cst_7 : f32 to vector<256x64xf32>
    %9 = arith.maximumf %7, %8 : vector<256x64xf32>
    %10 = vector.shape_cast %9 : vector<256x64xf32> to vector<16x16x64xf32>
    %11 = arith.truncf %10 : vector<16x16x64xf32> to vector<16x16x64xbf16>
    %c0_8 = arith.constant 0 : index
    %c0_9 = arith.constant 0 : index
    %c0_10 = arith.constant 0 : index
    %c0_11 = arith.constant 0 : index
    %12 = vector.load %arg5[%c0_8, %c0_9, %c0_10, %c0_11] : memref<1x16x16x64xbf16, #tpu.memory_space<vmem>>, vector<1x16x16x64xbf16>
    %13 = vector.shape_cast %12 : vector<1x16x16x64xbf16> to vector<16x16x64xbf16>
    %14 = vector.shape_cast %11 : vector<16x16x64xbf16> to vector<1x16x16x64xbf16>
    tpu.vector_store %arg5[%c0_8, %c0_9, %c0_10, %c0_11], %14 {strides = array<i32>} : memref<1x16x16x64xbf16, #tpu.memory_space<vmem>>, vector<1x16x16x64xbf16>,
    return
  }
  func.func @transform_0(%arg0: i32, %arg1: i32) -> (i32, i32, i32, i32) {
    %c0_i32 = arith.constant 0 : i32
    %c0_i32_0 = arith.constant 0 : i32
    %c0_i32_1 = arith.constant 0 : i32
    %c0_i32_2 = arith.constant 0 : i32
    return %arg0, %c0_i32, %c0_i32_0, %c0_i32_1 : i32, i32, i32, i32
  }
  func.func @transform_1(%arg0: i32, %arg1: i32) -> (i32, i32) {
    %c0_i32 = arith.constant 0 : i32
    %c0_i32_0 = arith.constant 0 : i32
    return %c0_i32, %arg1 : i32, i32
  }
  func.func @transform_2(%arg0: i32, %arg1: i32) -> (i32, i32) {
    %c0_i32 = arith.constant 0 : i32
    %c0_i32_0 = arith.constant 0 : i32
    return %c0_i32, %arg1 : i32, i32
  }
  func.func @transform_3(%arg0: i32, %arg1: i32) -> (i32, i32, i32, i32) {
    %c0_i32 = arith.constant 0 : i32
    %c0_i32_0 = arith.constant 0 : i32
    %c0_i32_1 = arith.constant 0 : i32
    return %arg0, %c0_i32, %c0_i32_0, %arg1 : i32, i32, i32, i32
  }
}

</mosaic_0001>

<llo_original>
// kernel: tpu_custom_call.1
$region0: #{tpu_custom_call.1}
  #allocation0 [shape = 'u32[]', space=smem, size = 0x4, offset = 0x4, fixed_abs, tag = 'smem constant byte address 0x4 - core index']
  #allocation1 [shape = 'u32[144,128]{1,0:T(1,128)}', space=vmem, size = 0x12000, scoped, tag = 'internal scratch']
  %s0 = inlined_call_operand.hbm [shape: bf16[2,16,16,27], index: 0, kind: input, shape index: {}]
  %s1 = inlined_call_operand.hbm [shape: bf16[27,64], index: 1, kind: input, shape index: {}]
  %s2 = inlined_call_operand.vmem [shape: f32[1,64], index: 2, kind: input, shape index: {}]
  %s3 = inlined_call_operand.hbm [shape: bf16[2,16,16,64], index: 3, kind: output, shape index: {}]
  %s4 = sld [smem:[#allocation0]]
  $region53: #{tpu_custom_call.1} parent=0
    _
  %s6 = ssub.s32 1, %s4
  %s7 = scalar_select 0, %s6, %s4
  $region1: #{tpu_custom_call.1} parent=0
    #allocation2 [shape = 'u8[131072]{0}', space=vmem, size = 0x20000, scoped, tag = 'input window, operand 0']
    #allocation3 [shape = 's32[2]{0}', space=sflag, size = 0x8, scoped, tag = 'scoped memory for tpu_custom_call.1']
    #allocation4 [shape = 's32[2]{0}', space=sflag, size = 0x8, scoped, tag = 'scoped memory for tpu_custom_call.1']
    #allocation5 [shape = 'u8[8192]{0}', space=vmem, size = 0x2000, scoped, tag = 'input window, operand 1, single buffered']
    #allocation6 [shape = 's32[1]{0}', space=sflag, size = 0x4, scoped, tag = 'scoped memory for tpu_custom_call.1']
    #allocation7 [shape = 'u8[131072]{0}', space=vmem, size = 0x20000, scoped, tag = 'output window, operand 0']
    %8 = vsyncpa [#allocation3], 0
    %s9 = scalar_lea.sflag [#allocation3], 1
    %10 = vsyncpa %s9, 0
    %11 = vsyncpa [#allocation6], 0
    %12 = vsyncpa [#allocation4], 0
    %s13 = scalar_lea.sflag [#allocation4], 1
    %14 = vsyncpa %s13, 0
    loop: start=0, step=1, limit=4
    $region2: #{tpu_custom_call.1} parent=1 // loop_pre_header
      _
    $region3: #{tpu_custom_call.1} parent=1 // loop_header
      %s16 = sphi 0, %s20
      %p17 = scmp.ge.s32.totalorder %s16, 4
      %s23 = sphi 0, %s35
      %s24 = sphi 0, %s31
      %s25 = sphi 0, %s23
      %s26 = sphi 0, %s24
      %s27 = sphi 0, %s25
      %s28 = sphi 0, %s26
      %s38 = sphi 0, %s40
      %s41 = sphi 0, %s38
      %s42 = sphi 0, %s41
      %s58 = sphi 0, %s42
      %s64 = sphi 0, %s66
      %s67 = sphi 0, %s64
      %s68 = sphi 0, %s67
      %s84 = sphi 0, %s68
      %s90 = sphi 0, %s92
      %s93 = sphi 0, %s90
      %s94 = sphi 0, %s93
      %s110 = sphi 0, %s94
      %s118 = sphi 0, %s120
      %s121 = sphi 0, %s118
      %s122 = sphi 0, %s121
      %s138 = sphi 0, %s122
    $region4: #{tpu_custom_call.1} parent=1 // loop_header_branch
      %19 = sbr.rel (%p17) target = $region8
    $region5: #{tpu_custom_call.1} parent=1 // loop_body
      %s21 = ssub.s32 %s16, 1
      %s22 = ssub.s32 %s16, 2
      %s29 = sadd.s32 1, %s24
      %p30 = scmp.ge.s32.totalorder %s29, 1
      %s31 = scalar_select %p30, 0, %s29
      %s32 = sadd.s32 1, %s23
      %s33 = scalar_select %p30, %s32, %s23
      %p34 = scmp.ge.s32.totalorder %s33, 2
      %s35 = scalar_select %p34, 0, %s33
      %s36 = ssub.s32 %s23, %s35
      %p37 = scmp.eq.s32.totalorder %s36, 0
      %s39 = sadd.s32 %s38, 1
      %s40 = scalar_select %p37, %s38, %s39
      %p43 = pneg %p37
      %p44 = scmp.eq.s32.totalorder %s16, 1
      %p45 = por %p43, %p44
      %p46 = scmp.ne.s32.totalorder %s38, %s41
      %p47 = scmp.eq.s32.totalorder %s16, 0
      %p48 = por %p46, %p47
      %p49 = scmp.ne.s32.totalorder %s38, %s41
      %p50 = scmp.eq.s32.totalorder %s21, 1
      %p51 = por %p49, %p50
      %p52 = scmp.ne.s32.totalorder %s41, %s42
      %p53 = scmp.eq.s32.totalorder %s21, 0
      %p54 = por %p52, %p53
      %p55 = scmp.ne.s32.totalorder %s41, %s42
      %p56 = scmp.eq.s32.totalorder %s22, 1
      %p57 = por %p55, %p56
      %p59 = scmp.ne.s32.totalorder %s42, %s58
      %p60 = scmp.eq.s32.totalorder %s22, 0
      %p61 = por %p59, %p60
      %s62 = ssub.s32 %s24, %s31
      %p63 = scmp.eq.s32.totalorder %s62, 0
      %s65 = sadd.s32 %s64, 1
      %s66 = scalar_select %p63, %s64, %s65
      %p69 = pneg %p63
      %p70 = scmp.eq.s32.totalorder %s16, 1
      %p71 = por %p69, %p70
      %p72 = scmp.ne.s32.totalorder %s64, %s67
      %p73 = scmp.eq.s32.totalorder %s16, 0
      %p74 = por %p72, %p73
      %p75 = scmp.ne.s32.totalorder %s64, %s67
      %p76 = scmp.eq.s32.totalorder %s21, 1
      %p77 = por %p75, %p76
      %p78 = scmp.ne.s32.totalorder %s67, %s68
      %p79 = scmp.eq.s32.totalorder %s21, 0
      %p80 = por %p78, %p79
      %p81 = scmp.ne.s32.totalorder %s67, %s68
      %p82 = scmp.eq.s32.totalorder %s22, 1
      %p83 = por %p81, %p82
      %p85 = scmp.ne.s32.totalorder %s68, %s84
      %p86 = scmp.eq.s32.totalorder %s22, 0
      %p87 = por %p85, %p86
      %s88 = ssub.s32 %s24, %s31
      %p89 = scmp.eq.s32.totalorder %s88, 0
      %s91 = sadd.s32 %s90, 1
      %s92 = scalar_select %p89, %s90, %s91
      %p95 = pneg %p89
      %p96 = scmp.eq.s32.totalorder %s16, 1
      %p97 = por %p95, %p96
      %p98 = scmp.ne.s32.totalorder %s90, %s93
      %p99 = scmp.eq.s32.totalorder %s16, 0
      %p100 = por %p98, %p99
      %p101 = scmp.ne.s32.totalorder %s90, %s93
      %p102 = scmp.eq.s32.totalorder %s21, 1
      %p103 = por %p101, %p102
      %p104 = scmp.ne.s32.totalorder %s93, %s94
      %p105 = scmp.eq.s32.totalorder %s21, 0
      %p106 = por %p104, %p105
      %p107 = scmp.ne.s32.totalorder %s93, %s94
      %p108 = scmp.eq.s32.totalorder %s22, 1
      %p109 = por %p107, %p108
      %p111 = scmp.ne.s32.totalorder %s94, %s110
      %p112 = scmp.eq.s32.totalorder %s22, 0
      %p113 = por %p111, %p112
      %s114 = ssub.s32 %s23, %s35
      %s115 = ssub.s32 %s24, %s31
      %s116 = sor.u32 %s114, %s115
      %p117 = scmp.eq.s32.totalorder %s116, 0
      %s119 = sadd.s32 %s118, 1
      %s120 = scalar_select %p117, %s118, %s119
      %p123 = pneg %p117
      %p124 = scmp.eq.s32.totalorder %s16, 1
      %p125 = por %p123, %p124
      %p126 = scmp.ne.s32.totalorder %s118, %s121
      %p127 = scmp.eq.s32.totalorder %s16, 0
      %p128 = por %p126, %p127
      %p129 = scmp.ne.s32.totalorder %s118, %s121
      %p130 = scmp.eq.s32.totalorder %s21, 1
      %p131 = por %p129, %p130
      %p132 = scmp.ne.s32.totalorder %s121, %s122
      %p133 = scmp.eq.s32.totalorder %s21, 0
      %p134 = por %p132, %p133
      %p135 = scmp.ne.s32.totalorder %s121, %s122
      %p136 = scmp.eq.s32.totalorder %s22, 1
      %p137 = por %p135, %p136
      %p139 = scmp.ne.s32.totalorder %s122, %s138
      %p140 = scmp.eq.s32.totalorder %s22, 0
      %p141 = por %p139, %p140
      %p142 = scmp.le.s32.totalorder 1, %s16
      %p143 = scmp.lt.s32.totalorder %s16, 3
      %p144 = pnand %p142, %p143
      %p145 = pneg %p144
      // Predicated region
      $region9: #{tpu_custom_call.1} parent=5 // pred_check
        _
      $region10: #{tpu_custom_call.1} parent=5 // pred_check_branch
        %147 = sbr.rel (%p144) target = $region12
      $region11: #{tpu_custom_call.1} parent=5 // pred_region
        %s148 = ssub.s32 %s16, 1
        // Predicated region
        $region13: #{tpu_custom_call.1} parent=11 // pred_check
          %p149 = pneg %p80
        $region14: #{tpu_custom_call.1} parent=11 // pred_check_branch
          %151 = sbr.rel (%p149) target = $region16
        $region15: #{tpu_custom_call.1} parent=11 // pred_region
          %s153 = ssub.s32 256, 256
          %154 = vsyncadd [#allocation6], %s153
          %s155 = smul.addr %s26, 64
          %s156 = scalar_lea.hbm %s1, %s155
          %s157 = sshll.u32 [#allocation5], 4
          %s158 = int_to_ptr.vmem [resolvable:$true] %s157
          %163 = dma.hbm_to_vmem [thread:$0]  %s156, 256, %s158, [#allocation6], 64, 64, 4
        $region16: #{tpu_custom_call.1} parent=11 // pred_fallthru
          _
        // Predicated region
        $region17: #{tpu_custom_call.1} parent=11 // pred_check
          %p164 = pneg %p106
        $region18: #{tpu_custom_call.1} parent=11 // pred_check_branch
          %166 = sbr.rel (%p164) target = $region20
        $region19: #{tpu_custom_call.1} parent=11 // pred_region
          %p167 = scmp.lt.s32.totalorder %s26, 0
          %s168 = scalar_select %p167, %s26, 0
          %s169 = scalar_lea.vmem %s2, %s168
        $region20: #{tpu_custom_call.1} parent=11 // pred_fallthru
          _
      $region12: #{tpu_custom_call.1} parent=5 // pred_fallthru
        _
      %p170 = scmp.lt.s32.totalorder %s16, 2
      // Predicated region
      $region21: #{tpu_custom_call.1} parent=5 // pred_check
        %p171 = pneg %p170
      $region22: #{tpu_custom_call.1} parent=5 // pred_check_branch
        %173 = sbr.rel (%p171) target = $region24
      $region23: #{tpu_custom_call.1} parent=5 // pred_region
        // Predicated region
        $region25: #{tpu_custom_call.1} parent=23 // pred_check
          %p174 = pneg %p48
        $region26: #{tpu_custom_call.1} parent=23 // pred_check_branch
          %176 = sbr.rel (%p174) target = $region28
        $region27: #{tpu_custom_call.1} parent=23 // pred_region
          %s177 = sand.u32 %s38, 1
          %s178 = scalar_lea.sflag [#allocation3], %s177
          %s179 = sand.u32 %s38, 1
          %s180 = smul.addr %s179, 128
          %s181 = scalar_lea.vmem [#allocation2], %s180
          %s183 = ssub.s32 2048, 2048
          %184 = vsyncadd %s178, %s183
          %s185 = smul.addr %s23, 32
          %s186 = smul.addr %s185, 64
          %s187 = scalar_lea.hbm %s0, %s186
          %s188 = sshll.u32 %s181, 4
          %s189 = int_to_ptr.vmem [resolvable:$true] %s188
          %194 = dma.hbm_to_vmem [thread:$0]  %s187, 2048, %s189, %s178, 64, 64, 4
        $region28: #{tpu_custom_call.1} parent=23 // pred_fallthru
          _
      $region24: #{tpu_custom_call.1} parent=5 // pred_fallthru
        _
      %p195 = scmp.le.s32.totalorder 1, %s16
      %p196 = scmp.lt.s32.totalorder %s16, 3
      %p197 = pnand %p195, %p196
      %p198 = pneg %p197
      // Predicated region
      $region29: #{tpu_custom_call.1} parent=5 // pred_check
        _
      $region30: #{tpu_custom_call.1} parent=5 // pred_check_branch
        %200 = sbr.rel (%p197) target = $region32
      $region31: #{tpu_custom_call.1} parent=5 // pred_region
        %s201 = ssub.s32 %s16, 1
        %s202 = sand.u32 %s41, 1
        %s203 = scalar_lea.sflag [#allocation3], %s202
        %s204 = sand.u32 %s41, 1
        %s205 = smul.addr %s204, 128
        %s206 = scalar_lea.vmem [#allocation2], %s205
        // Predicated region
        $region33: #{tpu_custom_call.1} parent=31 // pred_check
          %p207 = pneg %p54
        $region34: #{tpu_custom_call.1} parent=31 // pred_check_branch
          %209 = sbr.rel (%p207) target = $region36
        $region35: #{tpu_custom_call.1} parent=31 // pred_region
          %210 = dma.done %s203, 2048
        $region36: #{tpu_custom_call.1} parent=31 // pred_fallthru
          _
        // Predicated region
        $region37: #{tpu_custom_call.1} parent=31 // pred_check
          %p211 = pneg %p80
        $region38: #{tpu_custom_call.1} parent=31 // pred_check_branch
          %213 = sbr.rel (%p211) target = $region40
        $region39: #{tpu_custom_call.1} parent=31 // pred_region
          %214 = dma.done [#allocation6], 256
        $region40: #{tpu_custom_call.1} parent=31 // pred_fallthru
          _
        %s215 = sand.u32 %s41, 1
        %s216 = scalar_lea.sflag [#allocation3], %s215
        %s217 = sand.u32 %s41, 1
        %s218 = smul.addr %s217, 128
        %s219 = scalar_lea.vmem [#allocation2], %s218
        %p220 = pneg %p54
        %p221 = pneg %p51
        %p222 = pneg %p80
        %p223 = pneg %p77
        %p224 = scmp.lt.s32.totalorder %s26, 0
        %s225 = scalar_select %p224, %s26, 0
        %s226 = scalar_lea.vmem %s2, %s225
        %p227 = pneg %p106
        %p228 = pneg %p103
        %p229 = pneg %p134
        %p230 = pneg %p131
        %s231 = sand.u32 %s121, 1
        %s232 = scalar_lea.sflag [#allocation4], %s231
        %s233 = sand.u32 %s121, 1
        %s234 = smul.addr %s233, 128
        %s235 = scalar_lea.vmem [#allocation7], %s234
        %p236 = scmp.lt.s32.totalorder %s26, 0
        %s237 = scalar_select %p236, %s26, 0
        %s238 = scalar_lea.vmem %s2, %s237
        %v240 = vld [vmem:[%s206] sm:$0xf]
        %v241 = vld [vmem:[%s206 + $0x4] sm:$0xf]
        %v242 = vld [vmem:[%s206 + $0x8] sm:$0xf]
        %v243 = vld [vmem:[%s206 + $0xc] sm:$0xf]
        %v244 = vld [vmem:[%s206 + $0x10] sm:$0xf]
        %v245 = vld [vmem:[%s206 + $0x14] sm:$0xf]
        %v246 = vld [vmem:[%s206 + $0x18] sm:$0xf]
        %v247 = vld [vmem:[%s206 + $0x1c] sm:$0xf]
        %v248 = vld [vmem:[%s206 + $0x20] sm:$0xf]
        %v249 = vld [vmem:[%s206 + $0x24] sm:$0xf]
        %v250 = vld [vmem:[%s206 + $0x28] sm:$0xf]
        %v251 = vld [vmem:[%s206 + $0x2c] sm:$0xf]
        %v252 = vld [vmem:[%s206 + $0x30] sm:$0xf]
        %v253 = vld [vmem:[%s206 + $0x34] sm:$0xf]
        %v254 = vld [vmem:[%s206 + $0x38] sm:$0xf]
        %v255 = vld [vmem:[%s206 + $0x3c] sm:$0xf]
        %v256 = vld [vmem:[%s206 + $0x40] sm:$0xf]
        %v257 = vld [vmem:[%s206 + $0x44] sm:$0xf]
        %v258 = vld [vmem:[%s206 + $0x48] sm:$0xf]
        %v259 = vld [vmem:[%s206 + $0x4c] sm:$0xf]
        %v260 = vld [vmem:[%s206 + $0x50] sm:$0xf]
        %v261 = vld [vmem:[%s206 + $0x54] sm:$0xf]
        %v262 = vld [vmem:[%s206 + $0x58] sm:$0xf]
        %v263 = vld [vmem:[%s206 + $0x5c] sm:$0xf]
        %v264 = vld [vmem:[%s206 + $0x60] sm:$0xf]
        %v265 = vld [vmem:[%s206 + $0x64] sm:$0xf]
        %v266 = vld [vmem:[%s206 + $0x68] sm:$0xf]
        %v267 = vld [vmem:[%s206 + $0x6c] sm:$0xf]
        %v268 = vld [vmem:[%s206 + $0x70] sm:$0xf]
        %v269 = vld [vmem:[%s206 + $0x74] sm:$0xf]
        %v270 = vld [vmem:[%s206 + $0x78] sm:$0xf]
        %v271 = vld [vmem:[%s206 + $0x7c] sm:$0xf]
        %v272 = vld [vmem:[#allocation5] sm:$0xf]
        %v273 = vld [vmem:[#allocation5 + $0x4] sm:$0xf]
        %v274 = vld [vmem:[#allocation5 + $0x8] sm:$0xf]
        %v275 = vld [vmem:[#allocation5 + $0xc] sm:$0x3]
        %v276 = vld [vmem:[%s238] sm:$0x1]
        %v278 = vlaneseq
        %v279 = vshrl.u32 %v278, 7
        %v280 = vsub.s32 0, %v279
        %v281 = vrot.slane %v276, %v280
        %v315 = vunpack.c.l.b16 %v240
        %v316 = vunpack.c.l.b16 %v241
        %v317 = vunpack.c.l.b16 %v242
        %v318 = vunpack.c.l.b16 %v243
        %v319 = vunpack.c.l.b16 %v244
        %v320 = vunpack.c.l.b16 %v245
        %v321 = vunpack.c.l.b16 %v246
        %v322 = vunpack.c.l.b16 %v247
        %v323 = vunpack.c.l.b16 %v248
        %v324 = vunpack.c.l.b16 %v249
        %v325 = vunpack.c.l.b16 %v250
        %v326 = vunpack.c.l.b16 %v251
        %v327 = vunpack.c.l.b16 %v252
        %v328 = vunpack.c.l.b16 %v253
        %v329 = vunpack.c.l.b16 %v254
        %v330 = vunpack.c.l.b16 %v255
        %v331 = vunpack.c.l.b16 %v256
        %v332 = vunpack.c.l.b16 %v257
        %v333 = vunpack.c.l.b16 %v258
        %v334 = vunpack.c.l.b16 %v259
        %v335 = vunpack.c.l.b16 %v260
        %v336 = vunpack.c.l.b16 %v261
        %v337 = vunpack.c.l.b16 %v262
        %v338 = vunpack.c.l.b16 %v263
        %v339 = vunpack.c.l.b16 %v264
        %v340 = vunpack.c.l.b16 %v265
        %v341 = vunpack.c.l.b16 %v266
        %v342 = vunpack.c.l.b16 %v267
        %v343 = vunpack.c.l.b16 %v268
        %v344 = vunpack.c.l.b16 %v269
        %v345 = vunpack.c.l.b16 %v270
        %v346 = vunpack.c.l.b16 %v271
        %v347 = vpack.c.b16 %v316, %v315
        %v348 = vpack.c.b16 %v318, %v317
        %v349 = vpack.c.b16 %v320, %v319
        %v350 = vpack.c.b16 %v322, %v321
        %v351 = vpack.c.b16 %v324, %v323
        %v352 = vpack.c.b16 %v326, %v325
        %v353 = vpack.c.b16 %v328, %v327
        %v354 = vpack.c.b16 %v330, %v329
        %v355 = vpack.c.b16 %v332, %v331
        %v356 = vpack.c.b16 %v334, %v333
        %v357 = vpack.c.b16 %v336, %v335
        %v358 = vpack.c.b16 %v338, %v337
        %v359 = vpack.c.b16 %v340, %v339
        %v360 = vpack.c.b16 %v342, %v341
        %v361 = vpack.c.b16 %v344, %v343
        %v362 = vpack.c.b16 %v346, %v345
        %v367 = vunpack.c.l.b16 %v272
        %v368 = vunpack.c.l.b16 %v273
        %v369 = vunpack.c.l.b16 %v274
        %v370 = vunpack.c.l.b16 %v275
        %v371 = vpack.c.b16 %v368, %v367
        %v372 = vpack.c.b16 %v370, %v369
        %vm374 = vcmask 220160
        %v376 = vsel %vm374, %v347, 0
        %v379 = vsel %vm374, %v348, 0
        %v382 = vsel %vm374, %v349, 0
        %v385 = vsel %vm374, %v350, 0
        %v388 = vsel %vm374, %v351, 0
        %v391 = vsel %vm374, %v352, 0
        %v394 = vsel %vm374, %v353, 0
        %v397 = vsel %vm374, %v354, 0
        %v400 = vsel %vm374, %v355, 0
        %v403 = vsel %vm374, %v356, 0
        %v406 = vsel %vm374, %v357, 0
        %v409 = vsel %vm374, %v358, 0
        %v412 = vsel %vm374, %v359, 0
        %v415 = vsel %vm374, %v360, 0
        %v418 = vsel %vm374, %v361, 0
        %v421 = vsel %vm374, %v362, 0
        %vm423 = vcmask 1044480
        %vm424 = vcmask 1045504
        %v425 = vsel %vm423, 4294967295, 65535
        %v426 = vsel %vm424, %v425, 0
        %v428 = vand.u32 %v372, %v426
        %430 = vmatprep.subr.bf16.mxu0 0
        %431 = vmatpush1.bf16.msra.mxu0 %v371
        %432 = vmatprep.subr.bf16.mxu0 0
        %433 = vmatpush1.bf16.msra.mxu0 %v428
        %434 = vmatprep.subr.bf16.mxu0 0
        %435 = vmatpush1.bf16.msra.mxu0 0
        %436 = vmatprep.subr.bf16.mxu0 0
        %437 = vmatpush1.bf16.msra.mxu0 0
        %438 = vmatprep.subr.bf16.mxu0 0
        %439 = vmatpush1.bf16.msra.mxu0 0
        %440 = vmatprep.subr.bf16.mxu0 0
        %441 = vmatpush1.bf16.msra.mxu0 0
        %442 = vmatprep.subr.bf16.mxu0 0
        %443 = vmatpush1.bf16.msra.mxu0 0
        %444 = vmatprep.subr.bf16.mxu0 0
        %445 = vmatpush1.bf16.msra.mxu0 0
        %446 = vmatprep.subr.bf16.mxu0 0
        %447 = vmatpush1.bf16.msra.mxu0 0
        %448 = vmatprep.subr.bf16.mxu0 0
        %449 = vmatpush1.bf16.msra.mxu0 0
        %450 = vmatprep.subr.bf16.mxu0 0
        %451 = vmatpush1.bf16.msra.mxu0 0
        %452 = vmatprep.subr.bf16.mxu0 0
        %453 = vmatpush1.bf16.msra.mxu0 0
        %454 = vmatprep.subr.bf16.mxu0 0
        %455 = vmatpush1.bf16.msra.mxu0 0
        %456 = vmatprep.subr.bf16.mxu0 0
        %457 = vmatpush1.bf16.msra.mxu0 0
        %458 = vmatprep.subr.bf16.mxu0 0
        %459 = vmatpush1.bf16.msra.mxu0 0
        %460 = vmatprep.subr.bf16.mxu0 0
        %461 = vmatpush1.bf16.msra.mxu0 0
        %462 = vmatprep.mubr.bf16.mxu0 0
        %463 = vmatmul.mubr.bf16.gmra.mrb[0].mxu0 %v376
        %v464 = vpop.f32.mrb[0].mxu0
        %v465 = vadd.f32 %v281, %v464
        %v466 = vpop.f32.mrb[0].mxu0
        %v467 = vpop.f32.mrb[0].mxu0
        %v468 = vadd.f32 %v281, %v467
        %v469 = vpop.f32.mrb[0].mxu0
        %470 = vmatprep.mubr.bf16.mxu0 0
        %471 = vmatmul.mubr.bf16.gmra.mrb[0].mxu0 %v379
        %v472 = vpop.f32.mrb[0].mxu0
        %v473 = vadd.f32 %v281, %v472
        %v474 = vpop.f32.mrb[0].mxu0
        %v475 = vpop.f32.mrb[0].mxu0
        %v476 = vadd.f32 %v281, %v475
        %v477 = vpop.f32.mrb[0].mxu0
        %478 = vmatprep.mubr.bf16.mxu0 0
        %479 = vmatmul.mubr.bf16.gmra.mrb[0].mxu0 %v382
        %v480 = vpop.f32.mrb[0].mxu0
        %v481 = vadd.f32 %v281, %v480
        %v482 = vpop.f32.mrb[0].mxu0
        %v483 = vpop.f32.mrb[0].mxu0
        %v484 = vadd.f32 %v281, %v483
        %v485 = vpop.f32.mrb[0].mxu0
        %486 = vmatprep.mubr.bf16.mxu0 0
        %487 = vmatmul.mubr.bf16.gmra.mrb[0].mxu0 %v385
        %v488 = vpop.f32.mrb[0].mxu0
        %v489 = vadd.f32 %v281, %v488
        %v490 = vpop.f32.mrb[0].mxu0
        %v491 = vpop.f32.mrb[0].mxu0
        %v492 = vadd.f32 %v281, %v491
        %v493 = vpop.f32.mrb[0].mxu0
        %494 = vmatprep.mubr.bf16.mxu0 0
        %495 = vmatmul.mubr.bf16.gmra.mrb[0].mxu0 %v388
        %v496 = vpop.f32.mrb[0].mxu0
        %v497 = vadd.f32 %v281, %v496
        %v498 = vpop.f32.mrb[0].mxu0
        %v499 = vpop.f32.mrb[0].mxu0
        %v500 = vadd.f32 %v281, %v499
        %v501 = vpop.f32.mrb[0].mxu0
        %502 = vmatprep.mubr.bf16.mxu0 0
        %503 = vmatmul.mubr.bf16.gmra.mrb[0].mxu0 %v391
        %v504 = vpop.f32.mrb[0].mxu0
        %v505 = vadd.f32 %v281, %v504
        %v506 = vpop.f32.mrb[0].mxu0
        %v507 = vpop.f32.mrb[0].mxu0
        %v508 = vadd.f32 %v281, %v507
        %v509 = vpop.f32.mrb[0].mxu0
        %510 = vmatprep.mubr.bf16.mxu0 0
        %511 = vmatmul.mubr.bf16.gmra.mrb[0].mxu0 %v394
        %v512 = vpop.f32.mrb[0].mxu0
        %v513 = vadd.f32 %v281, %v512
        %v514 = vpop.f32.mrb[0].mxu0
        %v515 = vpop.f32.mrb[0].mxu0
        %v516 = vadd.f32 %v281, %v515
        %v517 = vpop.f32.mrb[0].mxu0
        %518 = vmatprep.mubr.bf16.mxu0 0
        %519 = vmatmul.mubr.bf16.gmra.mrb[0].mxu0 %v397
        %v520 = vpop.f32.mrb[0].mxu0
        %v521 = vadd.f32 %v281, %v520
        %v522 = vpop.f32.mrb[0].mxu0
        %v523 = vpop.f32.mrb[0].mxu0
        %v524 = vadd.f32 %v281, %v523
        %v525 = vpop.f32.mrb[0].mxu0
        %526 = vmatprep.mubr.bf16.mxu0 0
        %527 = vmatmul.mubr.bf16.gmra.mrb[0].mxu0 %v400
        %v528 = vpop.f32.mrb[0].mxu0
        %v529 = vadd.f32 %v281, %v528
        %v530 = vpop.f32.mrb[0].mxu0
        %v531 = vpop.f32.mrb[0].mxu0
        %v532 = vadd.f32 %v281, %v531
        %v533 = vpop.f32.mrb[0].mxu0
        %534 = vmatprep.mubr.bf16.mxu0 0
        %535 = vmatmul.mubr.bf16.gmra.mrb[0].mxu0 %v403
        %v536 = vpop.f32.mrb[0].mxu0
        %v537 = vadd.f32 %v281, %v536
        %v538 = vpop.f32.mrb[0].mxu0
        %v539 = vpop.f32.mrb[0].mxu0
        %v540 = vadd.f32 %v281, %v539
        %v541 = vpop.f32.mrb[0].mxu0
        %542 = vmatprep.mubr.bf16.mxu0 0
        %543 = vmatmul.mubr.bf16.gmra.mrb[0].mxu0 %v406
        %v544 = vpop.f32.mrb[0].mxu0
        %v545 = vadd.f32 %v281, %v544
        %v546 = vpop.f32.mrb[0].mxu0
        %v547 = vpop.f32.mrb[0].mxu0
        %v548 = vadd.f32 %v281, %v547
        %v549 = vpop.f32.mrb[0].mxu0
        %550 = vmatprep.mubr.bf16.mxu0 0
        %551 = vmatmul.mubr.bf16.gmra.mrb[0].mxu0 %v409
        %v552 = vpop.f32.mrb[0].mxu0
        %v553 = vadd.f32 %v281, %v552
        %v554 = vpop.f32.mrb[0].mxu0
        %v555 = vpop.f32.mrb[0].mxu0
        %v556 = vadd.f32 %v281, %v555
        %v557 = vpop.f32.mrb[0].mxu0
        %558 = vmatprep.mubr.bf16.mxu0 0
        %559 = vmatmul.mubr.bf16.gmra.mrb[0].mxu0 %v412
        %v560 = vpop.f32.mrb[0].mxu0
        %v561 = vadd.f32 %v281, %v560
        %v562 = vpop.f32.mrb[0].mxu0
        %v563 = vpop.f32.mrb[0].mxu0
        %v564 = vadd.f32 %v281, %v563
        %v565 = vpop.f32.mrb[0].mxu0
        %566 = vmatprep.mubr.bf16.mxu0 0
        %567 = vmatmul.mubr.bf16.gmra.mrb[0].mxu0 %v415
        %v568 = vpop.f32.mrb[0].mxu0
        %v569 = vadd.f32 %v281, %v568
        %v570 = vpop.f32.mrb[0].mxu0
        %v571 = vpop.f32.mrb[0].mxu0
        %v572 = vadd.f32 %v281, %v571
        %v573 = vpop.f32.mrb[0].mxu0
        %574 = vmatprep.mubr.bf16.mxu0 0
        %575 = vmatmul.mubr.bf16.gmra.mrb[0].mxu0 %v418
        %v576 = vpop.f32.mrb[0].mxu0
        %v577 = vadd.f32 %v281, %v576
        %v578 = vpop.f32.mrb[0].mxu0
        %v579 = vpop.f32.mrb[0].mxu0
        %v580 = vadd.f32 %v281, %v579
        %v581 = vpop.f32.mrb[0].mxu0
        %582 = vmatprep.mubr.bf16.mxu0 0
        %583 = vmatmul.mubr.bf16.gmra.mrb[0].mxu0 %v421
        %v584 = vpop.f32.mrb[0].mxu0
        %v585 = vadd.f32 %v281, %v584
        %v586 = vpop.f32.mrb[0].mxu0
        %v587 = vpop.f32.mrb[0].mxu0
        %v588 = vadd.f32 %v281, %v587
        %v589 = vpop.f32.mrb[0].mxu0
        %590 = vdwg.mxu0
        %v591 = vmax.f32 %v465, 0.0
        %v592 = vmax.f32 %v468, 0.0
        %v593 = vmax.f32 %v473, 0.0
        %v594 = vmax.f32 %v476, 0.0
        %v595 = vmax.f32 %v481, 0.0
        %v596 = vmax.f32 %v484, 0.0
        %v597 = vmax.f32 %v489, 0.0
        %v598 = vmax.f32 %v492, 0.0
        %v599 = vmax.f32 %v497, 0.0
        %v600 = vmax.f32 %v500, 0.0
        %v601 = vmax.f32 %v505, 0.0
        %v602 = vmax.f32 %v508, 0.0
        %v603 = vmax.f32 %v513, 0.0
        %v604 = vmax.f32 %v516, 0.0
        %v605 = vmax.f32 %v521, 0.0
        %v606 = vmax.f32 %v524, 0.0
        %v607 = vmax.f32 %v529, 0.0
        %v608 = vmax.f32 %v532, 0.0
        %v609 = vmax.f32 %v537, 0.0
        %v610 = vmax.f32 %v540, 0.0
        %v611 = vmax.f32 %v545, 0.0
        %v612 = vmax.f32 %v548, 0.0
        %v613 = vmax.f32 %v553, 0.0
        %v614 = vmax.f32 %v556, 0.0
        %v615 = vmax.f32 %v561, 0.0
        %v616 = vmax.f32 %v564, 0.0
        %v617 = vmax.f32 %v569, 0.0
        %v618 = vmax.f32 %v572, 0.0
        %v619 = vmax.f32 %v577, 0.0
        %v620 = vmax.f32 %v580, 0.0
        %v621 = vmax.f32 %v585, 0.0
        %v622 = vmax.f32 %v588, 0.0
        %v623 = vpack.c.bf16 %v592, %v591
        %v624 = vpack.c.bf16 %v594, %v593
        %v625 = vpack.c.bf16 %v596, %v595
        %v626 = vpack.c.bf16 %v598, %v597
        %v627 = vpack.c.bf16 %v600, %v599
        %v628 = vpack.c.bf16 %v602, %v601
        %v629 = vpack.c.bf16 %v604, %v603
        %v630 = vpack.c.bf16 %v606, %v605
        %v631 = vpack.c.bf16 %v608, %v607
        %v632 = vpack.c.bf16 %v610, %v609
        %v633 = vpack.c.bf16 %v612, %v611
        %v634 = vpack.c.bf16 %v614, %v613
        %v635 = vpack.c.bf16 %v616, %v615
        %v636 = vpack.c.bf16 %v618, %v617
        %v637 = vpack.c.bf16 %v620, %v619
        %v638 = vpack.c.bf16 %v622, %v621
        %v655 = vunpack.c.l.b16 %v623
        %v656 = vunpack.c.h.b16 %v623
        %v657 = vunpack.c.l.b16 %v624
        %v658 = vunpack.c.h.b16 %v624
        %v659 = vunpack.c.l.b16 %v625
        %v660 = vunpack.c.h.b16 %v625
        %v661 = vunpack.c.l.b16 %v626
        %v662 = vunpack.c.h.b16 %v626
        %v663 = vunpack.c.l.b16 %v627
        %v664 = vunpack.c.h.b16 %v627
        %v665 = vunpack.c.l.b16 %v628
        %v666 = vunpack.c.h.b16 %v628
        %v667 = vunpack.c.l.b16 %v629
        %v668 = vunpack.c.h.b16 %v629
        %v669 = vunpack.c.l.b16 %v630
        %v670 = vunpack.c.h.b16 %v630
        %v671 = vunpack.c.l.b16 %v631
        %v672 = vunpack.c.h.b16 %v631
        %v673 = vunpack.c.l.b16 %v632
        %v674 = vunpack.c.h.b16 %v632
        %v675 = vunpack.c.l.b16 %v633
        %v676 = vunpack.c.h.b16 %v633
        %v677 = vunpack.c.l.b16 %v634
        %v678 = vunpack.c.h.b16 %v634
        %v679 = vunpack.c.l.b16 %v635
        %v680 = vunpack.c.h.b16 %v635
        %v681 = vunpack.c.l.b16 %v636
        %v682 = vunpack.c.h.b16 %v636
        %v683 = vunpack.c.l.b16 %v637
        %v684 = vunpack.c.h.b16 %v637
        %v685 = vunpack.c.l.b16 %v638
        %v686 = vunpack.c.h.b16 %v638
        %v687 = vpack.c.b16 %v655, %v655
        %v688 = vpack.c.b16 %v656, %v656
        %v689 = vpack.c.b16 %v657, %v657
        %v690 = vpack.c.b16 %v658, %v658
        %v691 = vpack.c.b16 %v659, %v659
        %v692 = vpack.c.b16 %v660, %v660
        %v693 = vpack.c.b16 %v661, %v661
        %v694 = vpack.c.b16 %v662, %v662
        %v695 = vpack.c.b16 %v663, %v663
        %v696 = vpack.c.b16 %v664, %v664
        %v697 = vpack.c.b16 %v665, %v665
        %v698 = vpack.c.b16 %v666, %v666
        %v699 = vpack.c.b16 %v667, %v667
        %v700 = vpack.c.b16 %v668, %v668
        %v701 = vpack.c.b16 %v669, %v669
        %v702 = vpack.c.b16 %v670, %v670
        %v703 = vpack.c.b16 %v671, %v671
        %v704 = vpack.c.b16 %v672, %v672
        %v705 = vpack.c.b16 %v673, %v673
        %v706 = vpack.c.b16 %v674, %v674
        %v707 = vpack.c.b16 %v675, %v675
        %v708 = vpack.c.b16 %v676, %v676
        %v709 = vpack.c.b16 %v677, %v677
        %v710 = vpack.c.b16 %v678, %v678
        %v711 = vpack.c.b16 %v679, %v679
        %v712 = vpack.c.b16 %v680, %v680
        %v713 = vpack.c.b16 %v681, %v681
        %v714 = vpack.c.b16 %v682, %v682
        %v715 = vpack.c.b16 %v683, %v683
        %v716 = vpack.c.b16 %v684, %v684
        %v717 = vpack.c.b16 %v685, %v685
        %v718 = vpack.c.b16 %v686, %v686
        %vm751 = vcmask 519168
        %752 = vst.msk [vmem:[%s235] sm:$0xf] %vm751, %v687
        %753 = vst.msk [vmem:[%s235 + $0x4] sm:$0xf] %vm751, %v688
        %754 = vst.msk [vmem:[%s235 + $0x8] sm:$0xf] %vm751, %v689
        %755 = vst.msk [vmem:[%s235 + $0xc] sm:$0xf] %vm751, %v690
        %756 = vst.msk [vmem:[%s235 + $0x10] sm:$0xf] %vm751, %v691
        %757 = vst.msk [vmem:[%s235 + $0x14] sm:$0xf] %vm751, %v692
        %758 = vst.msk [vmem:[%s235 + $0x18] sm:$0xf] %vm751, %v693
        %759 = vst.msk [vmem:[%s235 + $0x1c] sm:$0xf] %vm751, %v694
        %760 = vst.msk [vmem:[%s235 + $0x20] sm:$0xf] %vm751, %v695
        %761 = vst.msk [vmem:[%s235 + $0x24] sm:$0xf] %vm751, %v696
        %762 = vst.msk [vmem:[%s235 + $0x28] sm:$0xf] %vm751, %v697
        %763 = vst.msk [vmem:[%s235 + $0x2c] sm:$0xf] %vm751, %v698
        %764 = vst.msk [vmem:[%s235 + $0x30] sm:$0xf] %vm751, %v699
        %765 = vst.msk [vmem:[%s235 + $0x34] sm:$0xf] %vm751, %v700
        %766 = vst.msk [vmem:[%s235 + $0x38] sm:$0xf] %vm751, %v701
        %767 = vst.msk [vmem:[%s235 + $0x3c] sm:$0xf] %vm751, %v702
        %768 = vst.msk [vmem:[%s235 + $0x40] sm:$0xf] %vm751, %v703
        %769 = vst.msk [vmem:[%s235 + $0x44] sm:$0xf] %vm751, %v704
        %770 = vst.msk [vmem:[%s235 + $0x48] sm:$0xf] %vm751, %v705
        %771 = vst.msk [vmem:[%s235 + $0x4c] sm:$0xf] %vm751, %v706
        %772 = vst.msk [vmem:[%s235 + $0x50] sm:$0xf] %vm751, %v707
        %773 = vst.msk [vmem:[%s235 + $0x54] sm:$0xf] %vm751, %v708
        %774 = vst.msk [vmem:[%s235 + $0x58] sm:$0xf] %vm751, %v709
        %775 = vst.msk [vmem:[%s235 + $0x5c] sm:$0xf] %vm751, %v710
        %776 = vst.msk [vmem:[%s235 + $0x60] sm:$0xf] %vm751, %v711
        %777 = vst.msk [vmem:[%s235 + $0x64] sm:$0xf] %vm751, %v712
        %778 = vst.msk [vmem:[%s235 + $0x68] sm:$0xf] %vm751, %v713
        %779 = vst.msk [vmem:[%s235 + $0x6c] sm:$0xf] %vm751, %v714
        %780 = vst.msk [vmem:[%s235 + $0x70] sm:$0xf] %vm751, %v715
        %781 = vst.msk [vmem:[%s235 + $0x74] sm:$0xf] %vm751, %v716
        %782 = vst.msk [vmem:[%s235 + $0x78] sm:$0xf] %vm751, %v717
        %783 = vst.msk [vmem:[%s235 + $0x7c] sm:$0xf] %vm751, %v718
        %s784 = sand.u32 %s121, 1
        %s785 = scalar_lea.sflag [#allocation4], %s784
        %s786 = sand.u32 %s121, 1
        %s787 = smul.addr %s786, 128
        %s788 = scalar_lea.vmem [#allocation7], %s787
        // Predicated region
        $region41: #{tpu_custom_call.1} parent=31 // pred_check
          %p789 = pneg %p131
        $region42: #{tpu_custom_call.1} parent=31 // pred_check_branch
          %791 = sbr.rel (%p789) target = $region44
        $region43: #{tpu_custom_call.1} parent=31 // pred_region
          %s793 = ssub.s32 2048, 2048
          %794 = vsyncadd %s785, %s793
          %s795 = smul.addr %s25, 32
          %s796 = sadd.s32 %s26, %s795
          %s797 = smul.addr %s796, 64
          %s798 = scalar_lea.hbm %s3, %s797
          %s799 = sshll.u32 %s788, 4
          %s800 = int_to_ptr.vmem [resolvable:$true] %s799
          %805 = dma.vmem_to_hbm [thread:$0]  %s800, 2048, %s798, %s785, 64, 64, 4
        $region44: #{tpu_custom_call.1} parent=31 // pred_fallthru
          _
      $region32: #{tpu_custom_call.1} parent=5 // pred_fallthru
        _
      %p806 = scmp.le.s32.totalorder 2, %s16
      // Predicated region
      $region45: #{tpu_custom_call.1} parent=5 // pred_check
        %p807 = pneg %p806
      $region46: #{tpu_custom_call.1} parent=5 // pred_check_branch
        %809 = sbr.rel (%p807) target = $region48
      $region47: #{tpu_custom_call.1} parent=5 // pred_region
        %s810 = ssub.s32 %s16, 2
        // Predicated region
        $region49: #{tpu_custom_call.1} parent=47 // pred_check
          %p811 = pneg %p137
        $region50: #{tpu_custom_call.1} parent=47 // pred_check_branch
          %813 = sbr.rel (%p811) target = $region52
        $region51: #{tpu_custom_call.1} parent=47 // pred_region
          %s814 = sand.u32 %s122, 1
          %s815 = scalar_lea.sflag [#allocation4], %s814
          %s816 = sand.u32 %s122, 1
          %s817 = smul.addr %s816, 128
          %s818 = scalar_lea.vmem [#allocation7], %s817
          %819 = dma.done %s815, 2048
        $region52: #{tpu_custom_call.1} parent=47 // pred_fallthru
          _
      $region48: #{tpu_custom_call.1} parent=5 // pred_fallthru
        _
    $region6: #{tpu_custom_call.1} parent=1 // loop_footer
      %s20 = sadd.s32 1, %s16
    $region7: #{tpu_custom_call.1} parent=1 // loop_footer_branch
      %15 = sbr.rel target = $region3
    $region8: #{tpu_custom_call.1} parent=1 // loop_exit
      _
    %820 = vsyncpa [#allocation3], 1
    %s821 = scalar_lea.sflag [#allocation3], 1
    %822 = vsyncpa %s821, 1
    %823 = vsyncpa [#allocation6], 1
    %824 = vsyncpa [#allocation4], 1
    %s825 = scalar_lea.sflag [#allocation4], 1
    %826 = vsyncpa %s825, 1

</llo_original>
